<compile_context>
chip_gen: v6e
topology: v6e:2x2x1
jax: 0.10.0
libtpu: 0.0.40
codegen_flags: <defaults>
</compile_context>

<pallas_src>
import functools
import math

import jax
import jax.numpy as jnp
from jax.experimental import pallas as pl
from jax.experimental.pallas import tpu as pltpu

LANE = 128      # lane width (last dim)
SUBLANE = 8     # sublane width (second-to-last dim)


def _round_up(v: int, m: int) -> int:
    return (v + m - 1) // m * m


def _pad2d(a, rows: int, cols: int):
    return jnp.pad(a, ((0, rows - a.shape[0]), (0, cols - a.shape[1])))


def _gcn2_fused_kernel(x_ref, adj_ref, w1_ref, b1_ref, w2_ref, b2_ref,
                       o_ref, h_ref, *, nclass: int, use_bf16: bool):
    """Fused 2-layer GCN:
       h   = relu(adj @ (x @ W1) + b1)        (kept resident in VMEM scratch)
       out = log_softmax(adj @ (h @ W2) + b2, axis=1)
    All operands are zero-padded to lane/sublane-friendly shapes by the wrapper;
    padded class lanes are masked before the softmax reductions.
    """
    x = x_ref[...]          # [Np, Fp]
    adj = adj_ref[...]      # [Np, Np]
    w1 = w1_ref[...]        # [Fp, Hp]
    b1 = b1_ref[...]        # [1,  Hp]   (padded bias entries are zero)

    if use_bf16:
        # bf16 MXU inputs, f32 accumulation (v6e/v7x fast path).
        def mm(a, b):
            return jnp.dot(a.astype(jnp.bfloat16), b.astype(jnp.bfloat16),
                           preferred_element_type=jnp.float32)
    else:
        def mm(a, b):
            return jnp.dot(a, b, preferred_element_type=jnp.float32)

    # ---- layer 0: support = x @ W1 ; h = relu(adj @ support + b1) ----------
    support1 = mm(x, w1)                               # [Np, Hp]  (MXU)
    h = jnp.maximum(mm(adj, support1) + b1, 0.0)       # f32 epilogue (v5e-safe)
    # TODO(synk): dropout is identity in eval mode (training=False); no RNG.
    h_ref[...] = h                                     # hidden stays in VMEM

    # ---- layer 1: logits = adj @ (h @ W2) + b2 ------------------------------
    w2 = w2_ref[...]        # [Hp, Cp]
    b2 = b2_ref[...]        # [1,  Cp]
    support2 = mm(h_ref[...], w2)                      # [Np, Cp]
    logits = mm(adj, support2) + b2                    # [Np, Cp], f32

    # ---- log_softmax over the (padded) class axis ---------------------------
    # Padded class lanes must not participate in the max / sum reductions.
    col = jax.lax.broadcasted_iota(jnp.int32, logits.shape, 1)
    logits = jnp.where(col < nclass, logits, jnp.float32(-1e30))
    m = jnp.max(logits, axis=1, keepdims=True)
    shifted = logits - m
    lse = jnp.log(jnp.sum(jnp.exp(shifted), axis=1, keepdims=True))
    o_ref[...] = (shifted - lse).astype(o_ref.dtype)


def gcn2_forward(x, adj, params, *, use_bf16_matmul: bool = False):
    """Full fused 2-layer GCN forward (eval mode); returns log-probabilities.

    Everything (padded x, adj, weights, hidden scratch, output) is VMEM
    resident, which is the right design for small/medium graphs.
    """
    (w1, b1), (w2, b2) = params
    n, nfeat = x.shape
    nhid = w1.shape[1]
    nclass = w2.shape[1]

    n_p = _round_up(n, SUBLANE)
    f_p = _round_up(nfeat, LANE)
    h_p = _round_up(nhid, LANE)
    c_p = _round_up(nclass, LANE)

    # TODO(synk): for large graphs (padded adj alone > ~24 MiB) this fully
    # VMEM-resident fused kernel must be replaced by a row/col tiled
    # accumulator grid (adj BlockSpec (TM, TK), contraction axis last,
    # @pl.when init/epilogue, 'parallel' row axis for megacore).
    vmem_bytes = 4 * (n_p * f_p + n_p * n_p + f_p * h_p + h_p * c_p
                      + n_p * h_p + n_p * c_p + h_p + c_p)
    assert vmem_bytes < 24 * 1024 * 1024, "graph too large for fused VMEM kernel"

    f32 = jnp.float32
    x_p = _pad2d(x.astype(f32), n_p, f_p)
    adj_p = _pad2d(adj.astype(f32), n_p, n_p)
    w1_p = _pad2d(w1.astype(f32), f_p, h_p)
    w2_p = _pad2d(w2.astype(f32), h_p, c_p)
    b1_p = jnp.pad(b1.astype(f32), (0, h_p - nhid)).reshape(1, h_p)
    b2_p = jnp.pad(b2.astype(f32), (0, c_p - nclass)).reshape(1, c_p)

    kernel = functools.partial(_gcn2_fused_kernel,
                               nclass=nclass, use_bf16=use_bf16_matmul)
    vmem_spec = pl.BlockSpec(memory_space=pltpu.MemorySpace.VMEM)

    out_padded = pl.pallas_call(
        kernel,
        out_shape=jax.ShapeDtypeStruct((n_p, c_p), jnp.float32),
        in_specs=[vmem_spec] * 6,
        out_specs=vmem_spec,
        scratch_shapes=[pltpu.VMEM((n_p, h_p), jnp.float32)],  # hidden h
    )(x_p, adj_p, w1_p, b1_p, w2_p, b2_p)

    return out_padded[:n, :nclass]


def gcn2_reference(x, adj, params):
    """Pure-JAX reference for correctness checking."""
    (w1, b1), (w2, b2) = params
    h = jnp.maximum(adj @ (x @ w1) + b1, 0.0)
    logits = adj @ (h @ w2) + b2
    return jax.nn.log_softmax(logits, axis=1)


def init_gcn_params(key, nfeat, nhid, nclass):
    """Matches GraphConvolution.reset_parameters:
    uniform(-stdv, stdv), stdv = 1/sqrt(in_features)."""
    params = []
    for fin, fout in [(nfeat, nhid), (nhid, nclass)]:
        key, kw, kb = jax.random.split(key, 3)
        stdv = 1.0 / math.sqrt(fin)
        w = jax.random.uniform(kw, (fin, fout), jnp.float32, -stdv, stdv)
        b = jax.random.uniform(kb, (fout,), jnp.float32, -stdv, stdv)
        params.append((w, b))
    return params


if __name__ == "__main__":
    key = jax.random.PRNGKey(0)
    kx, ka, kp = jax.random.split(key, 3)

    # small graph: N nodes, nfeat input features, nhid hidden, nclass classes
    N, NFEAT, NHID, NCLASS = 16, 32, 32, 8

    x = jax.random.normal(kx, (N, NFEAT), jnp.float32)

    # symmetric, D^-1/2 (A+I) D^-1/2 normalized adjacency
    a = (jax.random.uniform(ka, (N, N)) > 0.7).astype(jnp.float32)
    a = jnp.maximum(a, a.T)
    a = a + jnp.eye(N, dtype=jnp.float32)
    deg = jnp.sum(a, axis=1)
    d_inv_sqrt = 1.0 / jnp.sqrt(deg)
    adj = a * d_inv_sqrt[:, None] * d_inv_sqrt[None, :]

    params = init_gcn_params(kp, NFEAT, NHID, NCLASS)

    fwd = jax.jit(gcn2_forward, static_argnames=("use_bf16_matmul",))
    ref = gcn2_reference(x, adj, params)

    # f32 MXU path (bit-for-bit-ish vs reference)
    out_f32 = fwd(x, adj, params, use_bf16_matmul=False)
    jax.block_until_ready(out_f32)
    assert out_f32.shape == (N, NCLASS)
    assert bool(jnp.all(jnp.abs(out_f32 - ref) < 1e-4))
    row_sums = jnp.sum(jnp.exp(out_f32), axis=1)
    assert bool(jnp.all(jnp.abs(row_sums - 1.0) < 1e-4))

    # bf16-input MXU path (v6e/v7x throughput), f32 accumulation + epilogue
    out_bf16 = fwd(x, adj, params, use_bf16_matmul=True)
    jax.block_until_ready(out_bf16)
    assert bool(jnp.all(jnp.abs(out_bf16 - ref) < 5e-2))
    row_sums_bf16 = jnp.sum(jnp.exp(out_bf16), axis=1)
    assert bool(jnp.all(jnp.abs(row_sums_bf16 - 1.0) < 1e-3))

    print("KERNEL_OK")
</pallas_src>

<mosaic_0001>
module attributes {stable_mosaic.version = 11 : i64} {
  func.func @_gcn2_fused_kernel(%arg0: memref<16x128xf32, #tpu.memory_space<vmem>>, %arg1: memref<16x16xf32, #tpu.memory_space<vmem>>, %arg2: memref<128x128xf32, #tpu.memory_space<vmem>>, %arg3: memref<1x128xf32, #tpu.memory_space<vmem>>, %arg4: memref<128x128xf32, #tpu.memory_space<vmem>>, %arg5: memref<1x128xf32, #tpu.memory_space<vmem>>, %arg6: memref<16x128xf32, #tpu.memory_space<vmem>>, %arg7: memref<16x128xf32, #tpu.memory_space<vmem>>) attributes {dimension_semantics = [], scalar_prefetch = 0 : i64, scratch_operands = 1 : i64, tpu.core_type = #tpu.core_type<tc>} {
    %c0 = arith.constant 0 : index
    %c0_0 = arith.constant 0 : index
    %0 = vector.load %arg0[%c0, %c0_0] : memref<16x128xf32, #tpu.memory_space<vmem>>, vector<16x128xf32>
    %c0_1 = arith.constant 0 : index
    %c0_2 = arith.constant 0 : index
    %1 = vector.load %arg1[%c0_1, %c0_2] : memref<16x16xf32, #tpu.memory_space<vmem>>, vector<16x16xf32>
    %c0_3 = arith.constant 0 : index
    %c0_4 = arith.constant 0 : index
    %2 = vector.load %arg2[%c0_3, %c0_4] : memref<128x128xf32, #tpu.memory_space<vmem>>, vector<128x128xf32>
    %c0_5 = arith.constant 0 : index
    %c0_6 = arith.constant 0 : index
    %3 = vector.load %arg3[%c0_5, %c0_6] : memref<1x128xf32, #tpu.memory_space<vmem>>, vector<1x128xf32>
    %cst = arith.constant dense<0.000000e+00> : vector<16x128xf32>
    %4 = tpu.matmul %0, %2, %cst {dimension_numbers = #tpu.dot_dimension_numbers<[1], [0], [0], [1], [0, 0, 1, 1], [], []>} : vector<16x128xf32>, vector<128x128xf32>, vector<16x128xf32> -> vector<16x128xf32>
    %cst_7 = arith.constant dense<0.000000e+00> : vector<16x128xf32>
    %5 = tpu.matmul %1, %4, %cst_7 {dimension_numbers = #tpu.dot_dimension_numbers<[1], [0], [0], [1], [0, 0, 1, 1], [], []>} : vector<16x16xf32>, vector<16x128xf32>, vector<16x128xf32> -> vector<16x128xf32>
    %6 = vector.broadcast %3 : vector<1x128xf32> to vector<16x128xf32>
    %7 = arith.addf %5, %6 : vector<16x128xf32>
    %cst_8 = arith.constant 0.000000e+00 : f32
    %8 = vector.broadcast %cst_8 : f32 to vector<16x128xf32>
    %9 = arith.maximumf %7, %8 : vector<16x128xf32>
    %c0_9 = arith.constant 0 : index
    %c0_10 = arith.constant 0 : index
    %10 = vector.load %arg7[%c0_9, %c0_10] : memref<16x128xf32, #tpu.memory_space<vmem>>, vector<16x128xf32>
    tpu.vector_store %arg7[%c0_9, %c0_10], %9 {strides = array<i32>} : memref<16x128xf32, #tpu.memory_space<vmem>>, vector<16x128xf32>,
    %c0_11 = arith.constant 0 : index
    %c0_12 = arith.constant 0 : index
    %11 = vector.load %arg4[%c0_11, %c0_12] : memref<128x128xf32, #tpu.memory_space<vmem>>, vector<128x128xf32>
    %c0_13 = arith.constant 0 : index
    %c0_14 = arith.constant 0 : index
    %12 = vector.load %arg5[%c0_13, %c0_14] : memref<1x128xf32, #tpu.memory_space<vmem>>, vector<1x128xf32>
    %c0_15 = arith.constant 0 : index
    %c0_16 = arith.constant 0 : index
    %13 = vector.load %arg7[%c0_15, %c0_16] : memref<16x128xf32, #tpu.memory_space<vmem>>, vector<16x128xf32>
    %cst_17 = arith.constant dense<0.000000e+00> : vector<16x128xf32>
    %14 = tpu.matmul %13, %11, %cst_17 {dimension_numbers = #tpu.dot_dimension_numbers<[1], [0], [0], [1], [0, 0, 1, 1], [], []>} : vector<16x128xf32>, vector<128x128xf32>, vector<16x128xf32> -> vector<16x128xf32>
    %cst_18 = arith.constant dense<0.000000e+00> : vector<16x128xf32>
    %15 = tpu.matmul %1, %14, %cst_18 {dimension_numbers = #tpu.dot_dimension_numbers<[1], [0], [0], [1], [0, 0, 1, 1], [], []>} : vector<16x16xf32>, vector<16x128xf32>, vector<16x128xf32> -> vector<16x128xf32>
    %16 = vector.broadcast %12 : vector<1x128xf32> to vector<16x128xf32>
    %17 = arith.addf %15, %16 : vector<16x128xf32>
    %18 = tpu.iota {dimensions = array<i32: 1>} : vector<16x128xi32>
    %c8_i32 = arith.constant 8 : i32
    %19 = vector.broadcast %c8_i32 : i32 to vector<16x128xi32>
    %20 = arith.cmpi slt, %18, %19 : vector<16x128xi32>
    %cst_19 = arith.constant -1.000000e+30 : f32
    %21 = vector.broadcast %cst_19 : f32 to vector<16x128xf32>
    %22 = arith.select %20, %17, %21 : vector<16x128xi1>, vector<16x128xf32>
    %cst_20 = arith.constant dense<0xFF800000> : vector<16xf32>
    %23 = vector.multi_reduction <maximumf>, %22, %cst_20 [1] : vector<16x128xf32> to vector<16xf32>
    %24 = vector.shape_cast %23 : vector<16xf32> to vector<16x1xf32>
    %25 = vector.broadcast %24 : vector<16x1xf32> to vector<16x128xf32>
    %26 = arith.subf %22, %25 : vector<16x128xf32>
    %27 = math.exp %26 : vector<16x128xf32>
    %cst_21 = arith.constant dense<0.000000e+00> : vector<16xf32>
    %28 = vector.multi_reduction <add>, %27, %cst_21 [1] : vector<16x128xf32> to vector<16xf32>
    %29 = vector.shape_cast %28 : vector<16xf32> to vector<16x1xf32>
    %30 = math.log %29 : vector<16x1xf32>
    %31 = vector.broadcast %30 : vector<16x1xf32> to vector<16x128xf32>
    %32 = arith.subf %26, %31 : vector<16x128xf32>
    %c0_22 = arith.constant 0 : index
    %c0_23 = arith.constant 0 : index
    %33 = vector.load %arg6[%c0_22, %c0_23] : memref<16x128xf32, #tpu.memory_space<vmem>>, vector<16x128xf32>
    tpu.vector_store %arg6[%c0_22, %c0_23], %32 {strides = array<i32>} : memref<16x128xf32, #tpu.memory_space<vmem>>, vector<16x128xf32>,
    return
  }
}

</mosaic_0001>

<llo_original>
// kernel: gcn2_forward.1
$region0: #{gcn2_forward.1}
  #allocation0 [shape = 'u32[]', space=smem, size = 0x4, offset = 0x4, fixed_abs, tag = 'smem constant byte address 0x4 - core index']
  #allocation1 [shape = 'u32[144,128]{1,0:T(1,128)}', space=vmem, size = 0x12000, scoped, tag = 'internal scratch']
  #allocation2 [shape = 'f32[16,128]{1,0:T(8,128)}', space=vmem, size = 0x2000, scoped, tag = 'scratch operand']
  %s0 = inlined_call_operand.vmem [shape: f32[16,128], index: 0, kind: input, shape index: {}]
  %s1 = inlined_call_operand.vmem [shape: f32[16,16], index: 1, kind: input, shape index: {}]
  %s2 = inlined_call_operand.vmem [shape: f32[128,128], index: 2, kind: input, shape index: {}]
  %s3 = inlined_call_operand.vmem [shape: f32[1,128], index: 3, kind: input, shape index: {}]
  %s4 = inlined_call_operand.vmem [shape: f32[128,128], index: 4, kind: input, shape index: {}]
  %s5 = inlined_call_operand.vmem [shape: f32[1,128], index: 5, kind: input, shape index: {}]
  %s6 = inlined_call_operand.vmem [shape: f32[16,128], index: 6, kind: output, shape index: {}]
  %s7 = sld [smem:[#allocation0]]
  $region34: #{gcn2_forward.1} parent=0
    _
  %s9 = ssub.s32 1, %s7
  %s10 = scalar_select 0, %s9, %s7
  // Predicated region
  $region2: #{gcn2_forward.1} parent=0 // pred_check
    _
  $region3: #{gcn2_forward.1} parent=0 // pred_check_branch
    %12 = sbr.rel (0) target = $region5
  $region4: #{gcn2_forward.1} parent=0 // pred_region
    _
  $region5: #{gcn2_forward.1} parent=0 // pred_fallthru
    _
  // Predicated region
  $region6: #{gcn2_forward.1} parent=0 // pred_check
    _
  $region7: #{gcn2_forward.1} parent=0 // pred_check_branch
    %14 = sbr.rel (0) target = $region9
  $region8: #{gcn2_forward.1} parent=0 // pred_region
    _
  $region9: #{gcn2_forward.1} parent=0 // pred_fallthru
    _
  // Predicated region
  $region10: #{gcn2_forward.1} parent=0 // pred_check
    _
  $region11: #{gcn2_forward.1} parent=0 // pred_check_branch
    %16 = sbr.rel (0) target = $region13
  $region12: #{gcn2_forward.1} parent=0 // pred_region
    _
  $region13: #{gcn2_forward.1} parent=0 // pred_fallthru
    _
  // Predicated region
  $region14: #{gcn2_forward.1} parent=0 // pred_check
    _
  $region15: #{gcn2_forward.1} parent=0 // pred_check_branch
    %18 = sbr.rel (0) target = $region17
  $region16: #{gcn2_forward.1} parent=0 // pred_region
    _
  $region17: #{gcn2_forward.1} parent=0 // pred_fallthru
    _
  // Predicated region
  $region18: #{gcn2_forward.1} parent=0 // pred_check
    _
  $region19: #{gcn2_forward.1} parent=0 // pred_check_branch
    %20 = sbr.rel (0) target = $region21
  $region20: #{gcn2_forward.1} parent=0 // pred_region
    _
  $region21: #{gcn2_forward.1} parent=0 // pred_fallthru
    _
  // Predicated region
  $region22: #{gcn2_forward.1} parent=0 // pred_check
    _
  $region23: #{gcn2_forward.1} parent=0 // pred_check_branch
    %22 = sbr.rel (0) target = $region25
  $region24: #{gcn2_forward.1} parent=0 // pred_region
    _
  $region25: #{gcn2_forward.1} parent=0 // pred_fallthru
    _
  %v23 = vld [vmem:[%s0] sm:$0xff]
  %v24 = vld [vmem:[%s0 + $0x8] sm:$0xff]
  %v25 = vld [vmem:[%s1] sm:$0xff]
  %v26 = vld [vmem:[%s1 + $0x8] sm:$0xff]
  %v27 = vld [vmem:[%s2] sm:$0xff]
  %v28 = vld [vmem:[%s2 + $0x8] sm:$0xff]
  %v29 = vld [vmem:[%s2 + $0x10] sm:$0xff]
  %v30 = vld [vmem:[%s2 + $0x18] sm:$0xff]
  %v31 = vld [vmem:[%s2 + $0x20] sm:$0xff]
  %v32 = vld [vmem:[%s2 + $0x28] sm:$0xff]
  %v33 = vld [vmem:[%s2 + $0x30] sm:$0xff]
  %v34 = vld [vmem:[%s2 + $0x38] sm:$0xff]
  %v35 = vld [vmem:[%s2 + $0x40] sm:$0xff]
  %v36 = vld [vmem:[%s2 + $0x48] sm:$0xff]
  %v37 = vld [vmem:[%s2 + $0x50] sm:$0xff]
  %v38 = vld [vmem:[%s2 + $0x58] sm:$0xff]
  %v39 = vld [vmem:[%s2 + $0x60] sm:$0xff]
  %v40 = vld [vmem:[%s2 + $0x68] sm:$0xff]
  %v41 = vld [vmem:[%s2 + $0x70] sm:$0xff]
  %v42 = vld [vmem:[%s2 + $0x78] sm:$0xff]
  %v43 = vld [vmem:[%s3] sm:$0x1]
  %44 = vmatprep.subr.mxu0 0.0
  %45 = vmatpush1.msra.mxu0 %v42
  %46 = vmatprep.subr.mxu0 0.0
  %47 = vmatpush1.msra.mxu0 %v41
  %48 = vmatprep.subr.mxu0 0.0
  %49 = vmatpush1.msra.mxu0 %v40
  %50 = vmatprep.subr.mxu0 0.0
  %51 = vmatpush1.msra.mxu0 %v39
  %52 = vmatprep.subr.mxu0 0.0
  %53 = vmatpush1.msra.mxu0 %v38
  %54 = vmatprep.subr.mxu0 0.0
  %55 = vmatpush1.msra.mxu0 %v37
  %56 = vmatprep.subr.mxu0 0.0
  %57 = vmatpush1.msra.mxu0 %v36
  %58 = vmatprep.subr.mxu0 0.0
  %59 = vmatpush1.msra.mxu0 %v35
  %60 = vmatprep.subr.mxu0 0.0
  %61 = vmatpush1.msra.mxu0 %v34
  %62 = vmatprep.subr.mxu0 0.0
  %63 = vmatpush1.msra.mxu0 %v33
  %64 = vmatprep.subr.mxu0 0.0
  %65 = vmatpush1.msra.mxu0 %v32
  %66 = vmatprep.subr.mxu0 0.0
  %67 = vmatpush1.msra.mxu0 %v31
  %68 = vmatprep.subr.mxu0 0.0
  %69 = vmatpush1.msra.mxu0 %v30
  %70 = vmatprep.subr.mxu0 0.0
  %71 = vmatpush1.msra.mxu0 %v29
  %72 = vmatprep.subr.mxu0 0.0
  %73 = vmatpush1.msra.mxu0 %v28
  %74 = vmatprep.subr.mxu0 0.0
  %75 = vmatpush1.msra.mxu0 %v27
  %76 = vmatprep.subr.mxu0 0.0
  %77 = vmatpush2.msra.mxu0 0.0
  %78 = vmatprep.subr.mxu0 0.0
  %79 = vmatpush2.msra.mxu0 0.0
  %80 = vmatprep.subr.mxu0 0.0
  %81 = vmatpush2.msra.mxu0 0.0
  %82 = vmatprep.subr.mxu0 0.0
  %83 = vmatpush2.msra.mxu0 0.0
  %84 = vmatprep.subr.mxu0 0.0
  %85 = vmatpush2.msra.mxu0 0.0
  %86 = vmatprep.subr.mxu0 0.0
  %87 = vmatpush2.msra.mxu0 0.0
  %88 = vmatprep.subr.mxu0 0.0
  %89 = vmatpush2.msra.mxu0 0.0
  %90 = vmatprep.subr.mxu0 0.0
  %91 = vmatpush2.msra.mxu0 0.0
  %92 = vmatprep.subr.mxu0 0.0
  %93 = vmatpush2.msra.mxu0 0.0
  %94 = vmatprep.subr.mxu0 0.0
  %95 = vmatpush2.msra.mxu0 0.0
  %96 = vmatprep.subr.mxu0 0.0
  %97 = vmatpush2.msra.mxu0 0.0
  %98 = vmatprep.subr.mxu0 0.0
  %99 = vmatpush2.msra.mxu0 0.0
  %100 = vmatprep.subr.mxu0 0.0
  %101 = vmatpush2.msra.mxu0 0.0
  %102 = vmatprep.subr.mxu0 0.0
  %103 = vmatpush2.msra.mxu0 0.0
  %104 = vmatprep.subr.mxu0 0.0
  %105 = vmatpush2.msra.mxu0 0.0
  %106 = vmatprep.subr.mxu0 0.0
  %107 = vmatpush2.msra.mxu0 0.0
  %108 = vmatprep.mubr.f32.mxu0 0.0
  %109 = vmatmul.mubr.f32.gmra.mxu0 %v23
  %v110 = vpop.f32.mrf.mxu0
  %v111 = vadd.f32 0.0, %v110
  %v112 = vpop.f32.mrf.mxu0
  %113 = vmatprep.mubr.f32.mxu0 0.0
  %114 = vmatmul.mubr.f32.gmra.mxu0 %v24
  %v115 = vpop.f32.mrf.mxu0
  %v116 = vadd.f32 0.0, %v115
  %v117 = vpop.f32.mrf.mxu0
  %118 = vdwg.mxu0
  %v120 = vlaneseq
  %v121 = vshrl.u32 %v120, 7
  %v122 = vsub.s32 0, %v121
  %v123 = vrot.slane %v43, %v122
  %vm125 = vcmask 130048
  %v127 = vsel %vm125, %v25, 0
  %v130 = vsel %vm125, %v26, 0
  %132 = vmatprep.subr.mxu0 0.0
  %133 = vmatpush1.msra.mxu0 0.0
  %134 = vmatprep.subr.mxu0 0.0
  %135 = vmatpush1.msra.mxu0 0.0
  %136 = vmatprep.subr.mxu0 0.0
  %137 = vmatpush1.msra.mxu0 0.0
  %138 = vmatprep.subr.mxu0 0.0
  %139 = vmatpush1.msra.mxu0 0.0
  %140 = vmatprep.subr.mxu0 0.0
  %141 = vmatpush1.msra.mxu0 0.0
  %142 = vmatprep.subr.mxu0 0.0
  %143 = vmatpush1.msra.mxu0 0.0
  %144 = vmatprep.subr.mxu0 0.0
  %145 = vmatpush1.msra.mxu0 0.0
  %146 = vmatprep.subr.mxu0 0.0
  %147 = vmatpush1.msra.mxu0 0.0
  %148 = vmatprep.subr.mxu0 0.0
  %149 = vmatpush1.msra.mxu0 0.0
  %150 = vmatprep.subr.mxu0 0.0
  %151 = vmatpush1.msra.mxu0 0.0
  %152 = vmatprep.subr.mxu0 0.0
  %153 = vmatpush1.msra.mxu0 0.0
  %154 = vmatprep.subr.mxu0 0.0
  %155 = vmatpush1.msra.mxu0 0.0
  %156 = vmatprep.subr.mxu0 0.0
  %157 = vmatpush1.msra.mxu0 0.0
  %158 = vmatprep.subr.mxu0 0.0
  %159 = vmatpush1.msra.mxu0 0.0
  %160 = vmatprep.subr.mxu0 0.0
  %161 = vmatpush1.msra.mxu0 %v116
  %162 = vmatprep.subr.mxu0 0.0
  %163 = vmatpush1.msra.mxu0 %v111
  %164 = vmatprep.subr.mxu0 0.0
  %165 = vmatpush2.msra.mxu0 0.0
  %166 = vmatprep.subr.mxu0 0.0
  %167 = vmatpush2.msra.mxu0 0.0
  %168 = vmatprep.subr.mxu0 0.0
  %169 = vmatpush2.msra.mxu0 0.0
  %170 = vmatprep.subr.mxu0 0.0
  %171 = vmatpush2.msra.mxu0 0.0
  %172 = vmatprep.subr.mxu0 0.0
  %173 = vmatpush2.msra.mxu0 0.0
  %174 = vmatprep.subr.mxu0 0.0
  %175 = vmatpush2.msra.mxu0 0.0
  %176 = vmatprep.subr.mxu0 0.0
  %177 = vmatpush2.msra.mxu0 0.0
  %178 = vmatprep.subr.mxu0 0.0
  %179 = vmatpush2.msra.mxu0 0.0
  %180 = vmatprep.subr.mxu0 0.0
  %181 = vmatpush2.msra.mxu0 0.0
  %182 = vmatprep.subr.mxu0 0.0
  %183 = vmatpush2.msra.mxu0 0.0
  %184 = vmatprep.subr.mxu0 0.0
  %185 = vmatpush2.msra.mxu0 0.0
  %186 = vmatprep.subr.mxu0 0.0
  %187 = vmatpush2.msra.mxu0 0.0
  %188 = vmatprep.subr.mxu0 0.0
  %189 = vmatpush2.msra.mxu0 0.0
  %190 = vmatprep.subr.mxu0 0.0
  %191 = vmatpush2.msra.mxu0 0.0
  %192 = vmatprep.subr.mxu0 0.0
  %193 = vmatpush2.msra.mxu0 0.0
  %194 = vmatprep.subr.mxu0 0.0
  %195 = vmatpush2.msra.mxu0 0.0
  %196 = vmatprep.mubr.f32.mxu0 0.0
  %197 = vmatmul.mubr.f32.gmra.mxu0 %v127
  %v198 = vpop.f32.mrf.mxu0
  %v199 = vadd.f32 %v123, %v198
  %v200 = vpop.f32.mrf.mxu0
  %201 = vmatprep.mubr.f32.mxu0 0.0
  %202 = vmatmul.mubr.f32.gmra.mxu0 %v130
  %v203 = vpop.f32.mrf.mxu0
  %v204 = vadd.f32 %v123, %v203
  %v205 = vpop.f32.mrf.mxu0
  %206 = vdwg.mxu0
  %v207 = vmax.f32 %v199, 0.0
  %v208 = vmax.f32 %v204, 0.0
  %209 = vst [vmem:[#allocation2] sm:$0xff] %v207
  %210 = vst [vmem:[#allocation2 + $0x8] sm:$0xff] %v208
  %v211 = vld [vmem:[%s4] sm:$0xff]
  %v212 = vld [vmem:[%s4 + $0x8] sm:$0xff]
  %v213 = vld [vmem:[%s4 + $0x10] sm:$0xff]
  %v214 = vld [vmem:[%s4 + $0x18] sm:$0xff]
  %v215 = vld [vmem:[%s4 + $0x20] sm:$0xff]
  %v216 = vld [vmem:[%s4 + $0x28] sm:$0xff]
  %v217 = vld [vmem:[%s4 + $0x30] sm:$0xff]
  %v218 = vld [vmem:[%s4 + $0x38] sm:$0xff]
  %v219 = vld [vmem:[%s4 + $0x40] sm:$0xff]
  %v220 = vld [vmem:[%s4 + $0x48] sm:$0xff]
  %v221 = vld [vmem:[%s4 + $0x50] sm:$0xff]
  %v222 = vld [vmem:[%s4 + $0x58] sm:$0xff]
  %v223 = vld [vmem:[%s4 + $0x60] sm:$0xff]
  %v224 = vld [vmem:[%s4 + $0x68] sm:$0xff]
  %v225 = vld [vmem:[%s4 + $0x70] sm:$0xff]
  %v226 = vld [vmem:[%s4 + $0x78] sm:$0xff]
  %v227 = vld [vmem:[%s5] sm:$0x1]
  %v228 = vld [vmem:[#allocation2] sm:$0xff]
  %v229 = vld [vmem:[#allocation2 + $0x8] sm:$0xff]
  %230 = vmatprep.subr.mxu0 0.0
  %231 = vmatpush1.msra.mxu0 %v226
  %232 = vmatprep.subr.mxu0 0.0
  %233 = vmatpush1.msra.mxu0 %v225
  %234 = vmatprep.subr.mxu0 0.0
  %235 = vmatpush1.msra.mxu0 %v224
  %236 = vmatprep.subr.mxu0 0.0
  %237 = vmatpush1.msra.mxu0 %v223
  %238 = vmatprep.subr.mxu0 0.0
  %239 = vmatpush1.msra.mxu0 %v222
  %240 = vmatprep.subr.mxu0 0.0
  %241 = vmatpush1.msra.mxu0 %v221
  %242 = vmatprep.subr.mxu0 0.0
  %243 = vmatpush1.msra.mxu0 %v220
  %244 = vmatprep.subr.mxu0 0.0
  %245 = vmatpush1.msra.mxu0 %v219
  %246 = vmatprep.subr.mxu0 0.0
  %247 = vmatpush1.msra.mxu0 %v218
  %248 = vmatprep.subr.mxu0 0.0
  %249 = vmatpush1.msra.mxu0 %v217
  %250 = vmatprep.subr.mxu0 0.0
  %251 = vmatpush1.msra.mxu0 %v216
  %252 = vmatprep.subr.mxu0 0.0
  %253 = vmatpush1.msra.mxu0 %v215
  %254 = vmatprep.subr.mxu0 0.0
  %255 = vmatpush1.msra.mxu0 %v214
  %256 = vmatprep.subr.mxu0 0.0
  %257 = vmatpush1.msra.mxu0 %v213
  %258 = vmatprep.subr.mxu0 0.0
  %259 = vmatpush1.msra.mxu0 %v212
  %260 = vmatprep.subr.mxu0 0.0
  %261 = vmatpush1.msra.mxu0 %v211
  %262 = vmatprep.subr.mxu0 0.0
  %263 = vmatpush2.msra.mxu0 0.0
  %264 = vmatprep.subr.mxu0 0.0
  %265 = vmatpush2.msra.mxu0 0.0
  %266 = vmatprep.subr.mxu0 0.0
  %267 = vmatpush2.msra.mxu0 0.0
  %268 = vmatprep.subr.mxu0 0.0
  %269 = vmatpush2.msra.mxu0 0.0
  %270 = vmatprep.subr.mxu0 0.0
  %271 = vmatpush2.msra.mxu0 0.0
  %272 = vmatprep.subr.mxu0 0.0
  %273 = vmatpush2.msra.mxu0 0.0
  %274 = vmatprep.subr.mxu0 0.0
  %275 = vmatpush2.msra.mxu0 0.0
  %276 = vmatprep.subr.mxu0 0.0
  %277 = vmatpush2.msra.mxu0 0.0
  %278 = vmatprep.subr.mxu0 0.0
  %279 = vmatpush2.msra.mxu0 0.0
  %280 = vmatprep.subr.mxu0 0.0
  %281 = vmatpush2.msra.mxu0 0.0
  %282 = vmatprep.subr.mxu0 0.0
  %283 = vmatpush2.msra.mxu0 0.0
  %284 = vmatprep.subr.mxu0 0.0
  %285 = vmatpush2.msra.mxu0 0.0
  %286 = vmatprep.subr.mxu0 0.0
  %287 = vmatpush2.msra.mxu0 0.0
  %288 = vmatprep.subr.mxu0 0.0
  %289 = vmatpush2.msra.mxu0 0.0
  %290 = vmatprep.subr.mxu0 0.0
  %291 = vmatpush2.msra.mxu0 0.0
  %292 = vmatprep.subr.mxu0 0.0
  %293 = vmatpush2.msra.mxu0 0.0
  %294 = vmatprep.mubr.f32.mxu0 0.0
  %295 = vmatmul.mubr.f32.gmra.mxu0 %v228
  %v296 = vpop.f32.mrf.mxu0
  %v297 = vadd.f32 0.0, %v296
  %v298 = vpop.f32.mrf.mxu0
  %299 = vmatprep.mubr.f32.mxu0 0.0
  %300 = vmatmul.mubr.f32.gmra.mxu0 %v229
  %v301 = vpop.f32.mrf.mxu0
  %v302 = vadd.f32 0.0, %v301
  %v303 = vpop.f32.mrf.mxu0
  %304 = vdwg.mxu0
  %v306 = vlaneseq
  %v307 = vshrl.u32 %v306, 7
  %v308 = vsub.s32 0, %v307
  %v309 = vrot.slane %v227, %v308
  %311 = vmatprep.subr.mxu0 0.0
  %312 = vmatpush1.msra.mxu0 0.0
  %313 = vmatprep.subr.mxu0 0.0
  %314 = vmatpush1.msra.mxu0 0.0
  %315 = vmatprep.subr.mxu0 0.0
  %316 = vmatpush1.msra.mxu0 0.0
  %317 = vmatprep.subr.mxu0 0.0
  %318 = vmatpush1.msra.mxu0 0.0
  %319 = vmatprep.subr.mxu0 0.0
  %320 = vmatpush1.msra.mxu0 0.0
  %321 = vmatprep.subr.mxu0 0.0
  %322 = vmatpush1.msra.mxu0 0.0
  %323 = vmatprep.subr.mxu0 0.0
  %324 = vmatpush1.msra.mxu0 0.0
  %325 = vmatprep.subr.mxu0 0.0
  %326 = vmatpush1.msra.mxu0 0.0
  %327 = vmatprep.subr.mxu0 0.0
  %328 = vmatpush1.msra.mxu0 0.0
  %329 = vmatprep.subr.mxu0 0.0
  %330 = vmatpush1.msra.mxu0 0.0
  %331 = vmatprep.subr.mxu0 0.0
  %332 = vmatpush1.msra.mxu0 0.0
  %333 = vmatprep.subr.mxu0 0.0
  %334 = vmatpush1.msra.mxu0 0.0
  %335 = vmatprep.subr.mxu0 0.0
  %336 = vmatpush1.msra.mxu0 0.0
  %337 = vmatprep.subr.mxu0 0.0
  %338 = vmatpush1.msra.mxu0 0.0
  %339 = vmatprep.subr.mxu0 0.0
  %340 = vmatpush1.msra.mxu0 %v302
  %341 = vmatprep.subr.mxu0 0.0
  %342 = vmatpush1.msra.mxu0 %v297
  %343 = vmatprep.subr.mxu0 0.0
  %344 = vmatpush2.msra.mxu0 0.0
  %345 = vmatprep.subr.mxu0 0.0
  %346 = vmatpush2.msra.mxu0 0.0
  %347 = vmatprep.subr.mxu0 0.0
  %348 = vmatpush2.msra.mxu0 0.0
  %349 = vmatprep.subr.mxu0 0.0
  %350 = vmatpush2.msra.mxu0 0.0
  %351 = vmatprep.subr.mxu0 0.0
  %352 = vmatpush2.msra.mxu0 0.0
  %353 = vmatprep.subr.mxu0 0.0
  %354 = vmatpush2.msra.mxu0 0.0
  %355 = vmatprep.subr.mxu0 0.0
  %356 = vmatpush2.msra.mxu0 0.0
  %357 = vmatprep.subr.mxu0 0.0
  %358 = vmatpush2.msra.mxu0 0.0
  %359 = vmatprep.subr.mxu0 0.0
  %360 = vmatpush2.msra.mxu0 0.0
  %361 = vmatprep.subr.mxu0 0.0
  %362 = vmatpush2.msra.mxu0 0.0
  %363 = vmatprep.subr.mxu0 0.0
  %364 = vmatpush2.msra.mxu0 0.0
  %365 = vmatprep.subr.mxu0 0.0
  %366 = vmatpush2.msra.mxu0 0.0
  %367 = vmatprep.subr.mxu0 0.0
  %368 = vmatpush2.msra.mxu0 0.0
  %369 = vmatprep.subr.mxu0 0.0
  %370 = vmatpush2.msra.mxu0 0.0
  %371 = vmatprep.subr.mxu0 0.0
  %372 = vmatpush2.msra.mxu0 0.0
  %373 = vmatprep.subr.mxu0 0.0
  %374 = vmatpush2.msra.mxu0 0.0
  %375 = vmatprep.mubr.f32.mxu0 0.0
  %376 = vmatmul.mubr.f32.gmra.mxu0 %v127
  %v377 = vpop.f32.mrf.mxu0
  %v378 = vadd.f32 %v309, %v377
  %v379 = vpop.f32.mrf.mxu0
  %380 = vmatprep.mubr.f32.mxu0 0.0
  %381 = vmatmul.mubr.f32.gmra.mxu0 %v130
  %v382 = vpop.f32.mrf.mxu0
  %v383 = vadd.f32 %v309, %v382
  %v384 = vpop.f32.mrf.mxu0
  %385 = vdwg.mxu0
  %v386 = vlaneseq
  %v387 = vand.u32 %v386, 127
  %vm388 = vcmp.lt.s32.totalorder %v387, 8
  %v389 = vsel %vm388, %v378, -1e+30
  %v390 = vsel %vm388, %v383, -1e+30
  %391 = vmax.xlane.f32.xlu0 %v389
  %v392 = vpop.xlane.xlu0 %391
  %393 = vmax.xlane.f32.xlu0 %v390
  %v394 = vpop.xlane.xlu0 %393
  %v395 = vsub.f32 %v389, %v392
  %v396 = vsub.f32 %v390, %v394
  %v397 = vmul.f32 %v395, 1.442695
  %v398 = vpow.pop %v397
  %v399 = vmul.f32 %v396, 1.442695
  %v400 = vpow.pop %v399
  %401 = vadd.xlane.f32.xlu0 %v398
  %v402 = vpop.xlane.xlu0 %401
  %403 = vadd.xlane.f32.xlu0 %v400
  %v404 = vpop.xlane.xlu0 %403
  %v405 = vlog2.pop %v402
  %v406 = vmul.f32 %v405, 0.6931472
  %v407 = vlog2.pop %v404
  %v408 = vmul.f32 %v407, 0.6931472
  %v409 = vsub.f32 %v395, %v406
  %v410 = vsub.f32 %v396, %v408
  %411 = vst [vmem:[%s6] sm:$0xff] %v409
  %412 = vst [vmem:[%s6 + $0x8] sm:$0xff] %v410
  // Predicated region
  $region26: #{gcn2_forward.1} parent=0 // pred_check
    _
  $region27: #{gcn2_forward.1} parent=0 // pred_check_branch
    %414 = sbr.rel (0) target = $region29
  $region28: #{gcn2_forward.1} parent=0 // pred_region
    _
  $region29: #{gcn2_forward.1} parent=0 // pred_fallthru
    _
  // Predicated region
  $region30: #{gcn2_forward.1} parent=0 // pred_check
    _
  $region31: #{gcn2_forward.1} parent=0 // pred_check_branch
    %416 = sbr.rel (0) target = $region33
  $region32: #{gcn2_forward.1} parent=0 // pred_region
    _
  $region33: #{gcn2_forward.1} parent=0 // pred_fallthru
    _

</llo_original>
